<compile_context>
chip_gen: v7x
topology: tpu7x:2x2x1
jax: 0.10.0
libtpu: 0.0.40
codegen_flags: <defaults>
</compile_context>

<pallas_src>
import jax
import jax.numpy as jnp
from jax.experimental import pallas as pl
from jax.experimental.pallas import tpu as pltpu


def _round_up(x, m):
    return (x + m - 1) // m * m


def _discriminator_kernel(s_ref, a_ref, w1s_ref, w1a_ref, w2_ref, w3r_ref,
                          b12_ref, b3_ref, o_ref):
    # Per grid step (batch-on-lanes layout):
    #   s_ref (n_state, TB)   a_ref (n_actions, TB)
    #   w1s   (H, n_state)    w1a   (H, n_actions)
    #   w2    (H, H)          w3r   (1, H)
    #   b12   (H, 2)  col 0 = b1, col 1 = b2      b3_ref (1, 1) SMEM scalar
    #   o_ref (1, TB)  lane-dense output row
    # Layer 1: fused "concat" -> split matmul, f32 accumulation on the MXU.
    h1 = (jnp.dot(w1s_ref[...], s_ref[...], preferred_element_type=jnp.float32)
          + jnp.dot(w1a_ref[...], a_ref[...], preferred_element_type=jnp.float32)
          + b12_ref[:, 0:1])
    h1 = jnp.where(h1 > 0, h1, 0.01 * h1)            # LeakyReLU (slope 0.01), lane-dense

    # Layer 2: (H, H) @ (H, TB)
    h2 = jnp.dot(w2_ref[...], h1, preferred_element_type=jnp.float32) + b12_ref[:, 1:2]
    h2 = jnp.where(h2 > 0, h2, 0.01 * h2)            # LeakyReLU

    # Layer 3: (1, H) @ (H, TB) -> already lane-dense (1, TB) row.
    z = jnp.dot(w3r_ref[...], h2, preferred_element_type=jnp.float32)
    z = z + b3_ref[0, 0]                              # scalar bias from SMEM

    # Dropout(0.5) is identity at eval; Sigmoid on the EUP.
    o_ref[...] = jax.nn.sigmoid(z)


def pack_params(params, n_state):
    """One-time repack of standard (w1,b1,w2,b2,w3,b3) params for the kernel.

    Weights are stored transposed so the kernel computes W^T @ x with batch on
    the lane axis.  Everything stays f32 (bf16 buys nothing at these dims).
    """
    w1, b1, w2, b2, w3, b3 = params
    w1s_t = jnp.asarray(w1[:n_state].T, jnp.float32)   # (H, n_state)
    w1a_t = jnp.asarray(w1[n_state:].T, jnp.float32)   # (H, n_actions)
    w2_t = jnp.asarray(w2.T, jnp.float32)              # (H, H)
    w3r = jnp.asarray(w3.T, jnp.float32)               # (1, H)
    b12 = jnp.stack([jnp.reshape(b1, (-1,)),
                     jnp.reshape(b2, (-1,))], axis=1).astype(jnp.float32)  # (H, 2)
    b3s = jnp.asarray(b3, jnp.float32).reshape(1, 1)   # (1, 1) -> SMEM
    return (w1s_t, w1a_t, w2_t, w3r, b12, b3s)


def discriminator_forward(state, action, packed_params, *, block_b=2048):
    """state: (B, n_state), action: (B, n_actions) -> (B, 1) f32 probabilities.

    block_b: batch tile (rounded up to a multiple of 128).  Defaults to 2048 so
    typical GAIL batches run in 1-2 grid steps.  On v7x keep the grid at >= 2
    steps for large batches so ("parallel",) shards work across both TCs.
    """
    state = state.astype(jnp.float32)                  # mirrors .type(FloatTensor)
    action = action.astype(jnp.float32)

    B, n_state = state.shape
    _, n_act = action.shape
    w1s, w1a, w2, w3r, b12, b3 = packed_params
    H = w2.shape[0]

    # Batch tiling: lane axis must be a multiple of 128 (>=128 even for tiny B).
    block_b = _round_up(max(block_b, 128), 128)
    bp_min = _round_up(max(B, 128), 128)
    TB = bp_min if bp_min <= block_b else block_b
    Bp = _round_up(B, TB)

    # Batch-on-lanes layout: transpose once in the wrapper (tiny feature dims).
    s_t = state.T                                      # (n_state, B)
    a_t = action.T                                     # (n_actions, B)
    if Bp != B:
        s_t = jnp.pad(s_t, ((0, 0), (0, Bp - B)))
        a_t = jnp.pad(a_t, ((0, 0), (0, Bp - B)))

    grid = (Bp // TB,)

    out_row = pl.pallas_call(
        _discriminator_kernel,
        out_shape=jax.ShapeDtypeStruct((1, Bp), jnp.float32),
        grid=grid,
        in_specs=[
            # activations: pipelined over the batch grid, lane-dense
            pl.BlockSpec((n_state, TB), lambda i: (0, i)),
            pl.BlockSpec((n_act, TB), lambda i: (0, i)),
            # weights/biases: constant index maps -> stay VMEM-resident across steps
            pl.BlockSpec((H, n_state), lambda i: (0, 0)),
            pl.BlockSpec((H, n_act), lambda i: (0, 0)),
            pl.BlockSpec((H, H), lambda i: (0, 0)),
            pl.BlockSpec((1, H), lambda i: (0, 0)),
            pl.BlockSpec((H, 2), lambda i: (0, 0)),
            # final bias as an SMEM scalar (no VMEM block / double buffer)
            pl.BlockSpec(memory_space=pltpu.MemorySpace.SMEM),
        ],
        # lane-dense output: batch on the lane axis
        out_specs=pl.BlockSpec((1, TB), lambda i: (0, i)),
        compiler_params=pltpu.CompilerParams(
            dimension_semantics=("parallel",)),        # megacore sharding on v7x
    )(s_t, a_t, w1s, w1a, w2, w3r, b12, b3)

    # (1, Bp) row -> (Bp, 1) column: identical row-major layout, so this is free.
    return out_row.reshape(Bp, 1)[:B]


def init_params(key, n_state, n_action, n_hidden):
    """Deterministic synthetic init (stand-in for _init_weight), PyTorch-style layout."""
    n_in = n_state + n_action
    ks = jax.random.split(key, 3)

    def lin(k, fan_in, fan_out):
        w = jax.random.normal(k, (fan_in, fan_out), jnp.float32) / jnp.sqrt(float(fan_in))
        b = jnp.zeros((1, fan_out), jnp.float32)
        return w, b

    w1, b1 = lin(ks[0], n_in, n_hidden)
    w2, b2 = lin(ks[1], n_hidden, n_hidden)
    w3, b3 = lin(ks[2], n_hidden, 1)
    return (w1, b1, w2, b2, w3, b3)


if __name__ == "__main__":
    # Pendulum-like dims: n_state = 3, n_actions = 1, hidden = 32, batch = 8.
    B, N_STATE, N_ACTION, N_HIDDEN = 8, 3, 1, 32

    key = jax.random.PRNGKey(0)
    k_s, k_a, k_p = jax.random.split(key, 3)

    state = jax.random.normal(k_s, (B, N_STATE), jnp.float32)
    action = jax.random.normal(k_a, (B, N_ACTION), jnp.float32)

    params = init_params(k_p, N_STATE, N_ACTION, N_HIDDEN)
    packed = pack_params(params, N_STATE)

    out = discriminator_forward(state, action, packed)
    out = jax.block_until_ready(out)

    # Pure-JAX reference (mirrors the PyTorch module at eval time).
    def ref_fwd(st, ac):
        w1, b1, w2, b2, w3, b3 = params
        x = jnp.concatenate([st, ac], axis=-1)
        h1 = x @ w1 + b1
        h1 = jnp.where(h1 > 0, h1, 0.01 * h1)
        h2 = h1 @ w2 + b2
        h2 = jnp.where(h2 > 0, h2, 0.01 * h2)
        return jax.nn.sigmoid(h2 @ w3 + b3)

    ref = ref_fwd(state, action)
    assert out.shape == (B, 1)
    assert jnp.allclose(out, ref, atol=1e-4, rtol=1e-4)

    # Secondary check: multi-step grid + batch padding path (B not a multiple of 128).
    B2 = 200
    k_s2, k_a2 = jax.random.split(jax.random.PRNGKey(1), 2)
    state2 = jax.random.normal(k_s2, (B2, N_STATE), jnp.float32)
    action2 = jax.random.normal(k_a2, (B2, N_ACTION), jnp.float32)
    out2 = jax.block_until_ready(
        discriminator_forward(state2, action2, packed, block_b=128))
    ref2 = ref_fwd(state2, action2)
    assert out2.shape == (B2, 1)
    assert jnp.allclose(out2, ref2, atol=1e-4, rtol=1e-4)

    print("KERNEL_OK")
</pallas_src>

<mosaic_0001>
module attributes {stable_mosaic.version = 11 : i64} {
  func.func @_discriminator_kernel(%arg0: i32, %arg1: memref<3x128xf32, #tpu.memory_space<vmem>>, %arg2: memref<1x128xf32, #tpu.memory_space<vmem>>, %arg3: memref<32x3xf32, #tpu.memory_space<vmem>>, %arg4: memref<32x1xf32, #tpu.memory_space<vmem>>, %arg5: memref<32x32xf32, #tpu.memory_space<vmem>>, %arg6: memref<1x32xf32, #tpu.memory_space<vmem>>, %arg7: memref<32x2xf32, #tpu.memory_space<vmem>>, %arg8: memref<1x1xf32, #tpu.memory_space<smem>>, %arg9: memref<1x128xf32, #tpu.memory_space<vmem>>) attributes {dimension_semantics = [#tpu.dimension_semantics<parallel>], iteration_bounds = array<i64: 1>, scalar_prefetch = 0 : i64, scratch_operands = 0 : i64, tpu.core_type = #tpu.core_type<tc>, window_params = [{transform_indices = @transform_0, window_bounds = array<i64: 3, 128>}, {transform_indices = @transform_1, window_bounds = array<i64: 1, 128>}, {pipeline_mode = #tpu.pipeline_mode<synchronous>, transform_indices = @transform_2, window_bounds = array<i64: 32, 3>}, {pipeline_mode = #tpu.pipeline_mode<synchronous>, transform_indices = @transform_3, window_bounds = array<i64: 32, 1>}, {pipeline_mode = #tpu.pipeline_mode<synchronous>, transform_indices = @transform_4, window_bounds = array<i64: 32, 32>}, {pipeline_mode = #tpu.pipeline_mode<synchronous>, transform_indices = @transform_5, window_bounds = array<i64: 1, 32>}, {pipeline_mode = #tpu.pipeline_mode<synchronous>, transform_indices = @transform_6, window_bounds = array<i64: 32, 2>}, {transform_indices = @transform_7, window_bounds = array<i64: 1, 1>}, {transform_indices = @transform_8, window_bounds = array<i64: 1, 128>}]} {
    %c0 = arith.constant 0 : index
    %c0_0 = arith.constant 0 : index
    %0 = vector.load %arg3[%c0, %c0_0] : memref<32x3xf32, #tpu.memory_space<vmem>>, vector<32x3xf32>
    %c0_1 = arith.constant 0 : index
    %c0_2 = arith.constant 0 : index
    %1 = vector.load %arg1[%c0_1, %c0_2] : memref<3x128xf32, #tpu.memory_space<vmem>>, vector<3x128xf32>
    %cst = arith.constant dense<0.000000e+00> : vector<32x128xf32>
    %2 = tpu.matmul %0, %1, %cst {dimension_numbers = #tpu.dot_dimension_numbers<[1], [0], [0], [1], [0, 0, 1, 1], [], []>} : vector<32x3xf32>, vector<3x128xf32>, vector<32x128xf32> -> vector<32x128xf32>
    %c0_3 = arith.constant 0 : index
    %c0_4 = arith.constant 0 : index
    %3 = vector.load %arg4[%c0_3, %c0_4] : memref<32x1xf32, #tpu.memory_space<vmem>>, vector<32x1xf32>
    %c0_5 = arith.constant 0 : index
    %c0_6 = arith.constant 0 : index
    %4 = vector.load %arg2[%c0_5, %c0_6] : memref<1x128xf32, #tpu.memory_space<vmem>>, vector<1x128xf32>
    %cst_7 = arith.constant dense<0.000000e+00> : vector<32x128xf32>
    %5 = tpu.matmul %3, %4, %cst_7 {dimension_numbers = #tpu.dot_dimension_numbers<[1], [0], [0], [1], [0, 0, 1, 1], [], []>} : vector<32x1xf32>, vector<1x128xf32>, vector<32x128xf32> -> vector<32x128xf32>
    %6 = arith.addf %2, %5 : vector<32x128xf32>
    %c0_8 = arith.constant 0 : index
    %c0_9 = arith.constant 0 : index
    %7 = vector.load %arg7[%c0_8, %c0_9] : memref<32x2xf32, #tpu.memory_space<vmem>>, vector<32x1xf32>
    %8 = vector.broadcast %7 : vector<32x1xf32> to vector<32x128xf32>
    %9 = arith.addf %6, %8 : vector<32x128xf32>
    %cst_10 = arith.constant 0.000000e+00 : f32
    %10 = vector.broadcast %cst_10 : f32 to vector<32x128xf32>
    %11 = arith.cmpf ogt, %9, %10 : vector<32x128xf32>
    %cst_11 = arith.constant 0.00999999977 : f32
    %12 = vector.broadcast %cst_11 : f32 to vector<32x128xf32>
    %13 = arith.mulf %12, %9 : vector<32x128xf32>
    %14 = arith.select %11, %9, %13 : vector<32x128xi1>, vector<32x128xf32>
    %c0_12 = arith.constant 0 : index
    %c0_13 = arith.constant 0 : index
    %15 = vector.load %arg5[%c0_12, %c0_13] : memref<32x32xf32, #tpu.memory_space<vmem>>, vector<32x32xf32>
    %cst_14 = arith.constant dense<0.000000e+00> : vector<32x128xf32>
    %16 = tpu.matmul %15, %14, %cst_14 {dimension_numbers = #tpu.dot_dimension_numbers<[1], [0], [0], [1], [0, 0, 1, 1], [], []>} : vector<32x32xf32>, vector<32x128xf32>, vector<32x128xf32> -> vector<32x128xf32>
    %c0_15 = arith.constant 0 : index
    %c1 = arith.constant 1 : index
    %17 = vector.load %arg7[%c0_15, %c1] : memref<32x2xf32, #tpu.memory_space<vmem>>, vector<32x1xf32>
    %18 = vector.broadcast %17 : vector<32x1xf32> to vector<32x128xf32>
    %19 = arith.addf %16, %18 : vector<32x128xf32>
    %cst_16 = arith.constant 0.000000e+00 : f32
    %20 = vector.broadcast %cst_16 : f32 to vector<32x128xf32>
    %21 = arith.cmpf ogt, %19, %20 : vector<32x128xf32>
    %cst_17 = arith.constant 0.00999999977 : f32
    %22 = vector.broadcast %cst_17 : f32 to vector<32x128xf32>
    %23 = arith.mulf %22, %19 : vector<32x128xf32>
    %24 = arith.select %21, %19, %23 : vector<32x128xi1>, vector<32x128xf32>
    %c0_18 = arith.constant 0 : index
    %c0_19 = arith.constant 0 : index
    %25 = vector.load %arg6[%c0_18, %c0_19] : memref<1x32xf32, #tpu.memory_space<vmem>>, vector<1x32xf32>
    %cst_20 = arith.constant dense<0.000000e+00> : vector<1x128xf32>
    %26 = tpu.matmul %25, %24, %cst_20 {dimension_numbers = #tpu.dot_dimension_numbers<[1], [0], [0], [1], [0, 0, 1, 1], [], []>} : vector<1x32xf32>, vector<32x128xf32>, vector<1x128xf32> -> vector<1x128xf32>
    %c0_21 = arith.constant 0 : index
    %c0_22 = arith.constant 0 : index
    %27 = memref.load %arg8[%c0_21, %c0_22] : memref<1x1xf32, #tpu.memory_space<smem>>
    %28 = vector.broadcast %27 : f32 to vector<1x128xf32>
    %29 = arith.addf %26, %28 : vector<1x128xf32>
    %30 = arith.negf %29 : vector<1x128xf32>
    %31 = math.exp %30 : vector<1x128xf32>
    %cst_23 = arith.constant 1.000000e+00 : f32
    %32 = vector.broadcast %cst_23 : f32 to vector<1x128xf32>
    %33 = arith.addf %32, %31 : vector<1x128xf32>
    %34 = arith.divf %32, %33 : vector<1x128xf32>
    %c0_24 = arith.constant 0 : index
    %c0_25 = arith.constant 0 : index
    %35 = vector.load %arg9[%c0_24, %c0_25] : memref<1x128xf32, #tpu.memory_space<vmem>>, vector<1x128xf32>
    tpu.vector_store %arg9[%c0_24, %c0_25], %34 {strides = array<i32>} : memref<1x128xf32, #tpu.memory_space<vmem>>, vector<1x128xf32>,
    return
  }
  func.func @transform_0(%arg0: i32) -> (i32, i32) {
    %c0_i32 = arith.constant 0 : i32
    %c0_i32_0 = arith.constant 0 : i32
    return %c0_i32, %arg0 : i32, i32
  }
  func.func @transform_1(%arg0: i32) -> (i32, i32) {
    %c0_i32 = arith.constant 0 : i32
    %c0_i32_0 = arith.constant 0 : i32
    return %c0_i32, %arg0 : i32, i32
  }
  func.func @transform_2(%arg0: i32) -> (i32, i32) {
    %c0_i32 = arith.constant 0 : i32
    %c0_i32_0 = arith.constant 0 : i32
    %c0_i32_1 = arith.constant 0 : i32
    return %c0_i32, %c0_i32_0 : i32, i32
  }
  func.func @transform_3(%arg0: i32) -> (i32, i32) {
    %c0_i32 = arith.constant 0 : i32
    %c0_i32_0 = arith.constant 0 : i32
    %c0_i32_1 = arith.constant 0 : i32
    return %c0_i32, %c0_i32_0 : i32, i32
  }
  func.func @transform_4(%arg0: i32) -> (i32, i32) {
    %c0_i32 = arith.constant 0 : i32
    %c0_i32_0 = arith.constant 0 : i32
    %c0_i32_1 = arith.constant 0 : i32
    return %c0_i32, %c0_i32_0 : i32, i32
  }
  func.func @transform_5(%arg0: i32) -> (i32, i32) {
    %c0_i32 = arith.constant 0 : i32
    %c0_i32_0 = arith.constant 0 : i32
    %c0_i32_1 = arith.constant 0 : i32
    return %c0_i32, %c0_i32_0 : i32, i32
  }
  func.func @transform_6(%arg0: i32) -> (i32, i32) {
    %c0_i32 = arith.constant 0 : i32
    %c0_i32_0 = arith.constant 0 : i32
    %c0_i32_1 = arith.constant 0 : i32
    return %c0_i32, %c0_i32_0 : i32, i32
  }
  func.func @transform_7(%arg0: i32) -> (i32, i32) {
    %c0_i32 = arith.constant 0 : i32
    %c0_i32_0 = arith.constant 0 : i32
    %c0_i32_1 = arith.constant 0 : i32
    return %c0_i32, %c0_i32_0 : i32, i32
  }
  func.func @transform_8(%arg0: i32) -> (i32, i32) {
    %c0_i32 = arith.constant 0 : i32
    %c0_i32_0 = arith.constant 0 : i32
    return %c0_i32, %arg0 : i32, i32
  }
}

</mosaic_0001>

<llo_original>
// kernel: tpu_custom_call.1
$region0: #{tpu_custom_call.1}
  #allocation0 [shape = 'u32[]', space=smem, size = 0x4, offset = 0x4, fixed_abs, tag = 'smem constant byte address 0x4 - core index']
  #allocation1 [shape = 'u32[144,128]{1,0:T(1,128)}', space=vmem, size = 0x12000, scoped, tag = 'internal scratch']
  #allocation2 [shape = 'f32[1,1]{1,0:T(1,128)S(6)}', space=smem, size = 0x200, scoped, tag = 'scoped memory for tpu_custom_call.1']
  %s0 = inlined_call_operand.vmem [shape: f32[3,128], index: 0, kind: input, shape index: {}]
  %s1 = inlined_call_operand.vmem [shape: f32[1,128], index: 1, kind: input, shape index: {}]
  %s2 = inlined_call_operand.vmem [shape: f32[32,3], index: 2, kind: input, shape index: {}]
  %s3 = inlined_call_operand.vmem [shape: f32[32,1], index: 3, kind: input, shape index: {}]
  %s4 = inlined_call_operand.vmem [shape: f32[32,32], index: 4, kind: input, shape index: {}]
  %s5 = inlined_call_operand.vmem [shape: f32[1,32], index: 5, kind: input, shape index: {}]
  %s6 = inlined_call_operand.vmem [shape: f32[32,2], index: 6, kind: input, shape index: {}]
  %s7 = inlined_call_operand.<no memory space> [shape: f32[1,1], index: 7, kind: input, shape index: {}]
  %s8 = inlined_call_operand.hbm [shape: f32[1,128], index: 8, kind: output, shape index: {}]
  %s9 = sld [smem:[#allocation0]]
  $region42: #{tpu_custom_call.1} parent=0
    _
  %s11 = ssub.s32 1, %s9
  %s12 = scalar_select 0, %s11, %s9
  %13 = sst [smem:[#allocation2]] %s7
  $region1: #{tpu_custom_call.1} parent=0
    #allocation3 [shape = 'u8[512]{0}', space=vmem, size = 0x400, scoped, tag = 'output window, operand 0, single buffered']
    #allocation4 [shape = 's32[1]{0}', space=sflag, size = 0x4, scoped, tag = 'scoped memory for tpu_custom_call.1']
    %14 = vsyncpa [#allocation4], 0
    // Predicated region
    $region2: #{tpu_custom_call.1} parent=1 // pred_check
      _
    $region3: #{tpu_custom_call.1} parent=1 // pred_check_branch
      %16 = sbr.rel (0) target = $region5
    $region4: #{tpu_custom_call.1} parent=1 // pred_region
      _
    $region5: #{tpu_custom_call.1} parent=1 // pred_fallthru
      _
    // Predicated region
    $region6: #{tpu_custom_call.1} parent=1 // pred_check
      _
    $region7: #{tpu_custom_call.1} parent=1 // pred_check_branch
      %18 = sbr.rel (0) target = $region9
    $region8: #{tpu_custom_call.1} parent=1 // pred_region
      _
    $region9: #{tpu_custom_call.1} parent=1 // pred_fallthru
      _
    // Predicated region
    $region10: #{tpu_custom_call.1} parent=1 // pred_check
      _
    $region11: #{tpu_custom_call.1} parent=1 // pred_check_branch
      %20 = sbr.rel (0) target = $region13
    $region12: #{tpu_custom_call.1} parent=1 // pred_region
      _
    $region13: #{tpu_custom_call.1} parent=1 // pred_fallthru
      _
    // Predicated region
    $region14: #{tpu_custom_call.1} parent=1 // pred_check
      _
    $region15: #{tpu_custom_call.1} parent=1 // pred_check_branch
      %22 = sbr.rel (0) target = $region17
    $region16: #{tpu_custom_call.1} parent=1 // pred_region
      _
    $region17: #{tpu_custom_call.1} parent=1 // pred_fallthru
      _
    // Predicated region
    $region18: #{tpu_custom_call.1} parent=1 // pred_check
      _
    $region19: #{tpu_custom_call.1} parent=1 // pred_check_branch
      %24 = sbr.rel (0) target = $region21
    $region20: #{tpu_custom_call.1} parent=1 // pred_region
      _
    $region21: #{tpu_custom_call.1} parent=1 // pred_fallthru
      _
    // Predicated region
    $region22: #{tpu_custom_call.1} parent=1 // pred_check
      _
    $region23: #{tpu_custom_call.1} parent=1 // pred_check_branch
      %26 = sbr.rel (0) target = $region25
    $region24: #{tpu_custom_call.1} parent=1 // pred_region
      _
    $region25: #{tpu_custom_call.1} parent=1 // pred_fallthru
      _
    // Predicated region
    $region26: #{tpu_custom_call.1} parent=1 // pred_check
      _
    $region27: #{tpu_custom_call.1} parent=1 // pred_check_branch
      %28 = sbr.rel (0) target = $region29
    $region28: #{tpu_custom_call.1} parent=1 // pred_region
      _
    $region29: #{tpu_custom_call.1} parent=1 // pred_fallthru
      _
    // Predicated region
    $region30: #{tpu_custom_call.1} parent=1 // pred_check
      _
    $region31: #{tpu_custom_call.1} parent=1 // pred_check_branch
      %30 = sbr.rel (0) target = $region33
    $region32: #{tpu_custom_call.1} parent=1 // pred_region
      _
    $region33: #{tpu_custom_call.1} parent=1 // pred_fallthru
      _
    %v31 = vld [vmem:[%s2] sm:$0xff]
    %v32 = vld [vmem:[%s2 + $0x8] sm:$0xff]
    %v33 = vld [vmem:[%s2 + $0x10] sm:$0xff]
    %v34 = vld [vmem:[%s2 + $0x18] sm:$0xff]
    %v35 = vld [vmem:[%s0] sm:$0x7]
    %v36 = vld [vmem:[%s3] sm:$0xff]
    %v37 = vld [vmem:[%s3 + $0x8] sm:$0xff]
    %v38 = vld [vmem:[%s3 + $0x10] sm:$0xff]
    %v39 = vld [vmem:[%s3 + $0x18] sm:$0xff]
    %v40 = vld [vmem:[%s1] sm:$0x1]
    %vm41 = vcmask 7168
    %v43 = vsel %vm41, %v36, 0
    %v46 = vsel %vm41, %v37, 0
    %v49 = vsel %vm41, %v38, 0
    %v52 = vsel %vm41, %v39, 0
    %vm54 = vcmask 1040384
    %v56 = vsel %vm54, %v40, 0
    %58 = vmatprep.subr.mxu0 0.0
    %59 = vmatpush1.msra.mxu0 %v56
    %60 = vmatprep.subr.mxu0 0.0
    %61 = vmatpush1.msra.mxu0 0.0
    %62 = vmatprep.subr.mxu0 0.0
    %63 = vmatpush1.msra.mxu0 0.0
    %64 = vmatprep.subr.mxu0 0.0
    %65 = vmatpush1.msra.mxu0 0.0
    %66 = vmatprep.subr.mxu0 0.0
    %67 = vmatpush1.msra.mxu0 0.0
    %68 = vmatprep.subr.mxu0 0.0
    %69 = vmatpush1.msra.mxu0 0.0
    %70 = vmatprep.subr.mxu0 0.0
    %71 = vmatpush1.msra.mxu0 0.0
    %72 = vmatprep.subr.mxu0 0.0
    %73 = vmatpush1.msra.mxu0 0.0
    %74 = vmatprep.subr.mxu0 0.0
    %75 = vmatpush1.msra.mxu0 0.0
    %76 = vmatprep.subr.mxu0 0.0
    %77 = vmatpush1.msra.mxu0 0.0
    %78 = vmatprep.subr.mxu0 0.0
    %79 = vmatpush1.msra.mxu0 0.0
    %80 = vmatprep.subr.mxu0 0.0
    %81 = vmatpush1.msra.mxu0 0.0
    %82 = vmatprep.subr.mxu0 0.0
    %83 = vmatpush1.msra.mxu0 0.0
    %84 = vmatprep.subr.mxu0 0.0
    %85 = vmatpush1.msra.mxu0 0.0
    %86 = vmatprep.subr.mxu0 0.0
    %87 = vmatpush1.msra.mxu0 0.0
    %88 = vmatprep.subr.mxu0 0.0
    %89 = vmatpush1.msra.mxu0 0.0
    %90 = vmatprep.subr.mxu0 0.0
    %91 = vmatpush1.msra.mxu0 0.0
    %92 = vmatprep.subr.mxu0 0.0
    %93 = vmatpush1.msra.mxu0 0.0
    %94 = vmatprep.subr.mxu0 0.0
    %95 = vmatpush1.msra.mxu0 0.0
    %96 = vmatprep.subr.mxu0 0.0
    %97 = vmatpush1.msra.mxu0 0.0
    %98 = vmatprep.subr.mxu0 0.0
    %99 = vmatpush1.msra.mxu0 0.0
    %100 = vmatprep.subr.mxu0 0.0
    %101 = vmatpush1.msra.mxu0 0.0
    %102 = vmatprep.subr.mxu0 0.0
    %103 = vmatpush1.msra.mxu0 0.0
    %104 = vmatprep.subr.mxu0 0.0
    %105 = vmatpush1.msra.mxu0 0.0
    %106 = vmatprep.subr.mxu0 0.0
    %107 = vmatpush1.msra.mxu0 0.0
    %108 = vmatprep.subr.mxu0 0.0
    %109 = vmatpush1.msra.mxu0 0.0
    %110 = vmatprep.subr.mxu0 0.0
    %111 = vmatpush1.msra.mxu0 0.0
    %112 = vmatprep.subr.mxu0 0.0
    %113 = vmatpush1.msra.mxu0 0.0
    %114 = vmatprep.subr.mxu0 0.0
    %115 = vmatpush1.msra.mxu0 0.0
    %116 = vmatprep.subr.mxu0 0.0
    %117 = vmatpush1.msra.mxu0 0.0
    %118 = vmatprep.subr.mxu0 0.0
    %119 = vmatpush1.msra.mxu0 0.0
    %120 = vmatprep.subr.mxu0 0.0
    %121 = vmatpush1.msra.mxu0 0.0
    %122 = vmatprep.mubr.f32.mxu0 0.0
    %123 = vmatmul.mubr.f32.gmra.mrb[0].mxu0 %v43
    %v124 = vpop.f32.mrb[0].mxu0
    %v125 = vadd.f32 0.0, %v124
    %v126 = vpop.f32.mrb[0].mxu0
    %127 = vmatprep.mubr.f32.mxu0 0.0
    %128 = vmatmul.mubr.f32.gmra.mrb[0].mxu0 %v46
    %v129 = vpop.f32.mrb[0].mxu0
    %v130 = vadd.f32 0.0, %v129
    %v131 = vpop.f32.mrb[0].mxu0
    %132 = vmatprep.mubr.f32.mxu0 0.0
    %133 = vmatmul.mubr.f32.gmra.mrb[0].mxu0 %v49
    %v134 = vpop.f32.mrb[0].mxu0
    %v135 = vadd.f32 0.0, %v134
    %v136 = vpop.f32.mrb[0].mxu0
    %137 = vmatprep.mubr.f32.mxu0 0.0
    %138 = vmatmul.mubr.f32.gmra.mrb[0].mxu0 %v52
    %v139 = vpop.f32.mrb[0].mxu0
    %v140 = vadd.f32 0.0, %v139
    %v141 = vpop.f32.mrb[0].mxu0
    %142 = vdwg.mxu0
    %vm143 = vcmask 23552
    %v145 = vsel %vm143, %v31, 0
    %v148 = vsel %vm143, %v32, 0
    %v151 = vsel %vm143, %v33, 0
    %v154 = vsel %vm143, %v34, 0
    %vm156 = vcmask 1042432
    %v158 = vsel %vm156, %v35, 0
    %160 = vmatprep.subr.mxu0 0.0
    %161 = vmatpush1.msra.mxu0 %v158
    %162 = vmatprep.subr.mxu0 0.0
    %163 = vmatpush1.msra.mxu0 0.0
    %164 = vmatprep.subr.mxu0 0.0
    %165 = vmatpush1.msra.mxu0 0.0
    %166 = vmatprep.subr.mxu0 0.0
    %167 = vmatpush1.msra.mxu0 0.0
    %168 = vmatprep.subr.mxu0 0.0
    %169 = vmatpush1.msra.mxu0 0.0
    %170 = vmatprep.subr.mxu0 0.0
    %171 = vmatpush1.msra.mxu0 0.0
    %172 = vmatprep.subr.mxu0 0.0
    %173 = vmatpush1.msra.mxu0 0.0
    %174 = vmatprep.subr.mxu0 0.0
    %175 = vmatpush1.msra.mxu0 0.0
    %176 = vmatprep.subr.mxu0 0.0
    %177 = vmatpush1.msra.mxu0 0.0
    %178 = vmatprep.subr.mxu0 0.0
    %179 = vmatpush1.msra.mxu0 0.0
    %180 = vmatprep.subr.mxu0 0.0
    %181 = vmatpush1.msra.mxu0 0.0
    %182 = vmatprep.subr.mxu0 0.0
    %183 = vmatpush1.msra.mxu0 0.0
    %184 = vmatprep.subr.mxu0 0.0
    %185 = vmatpush1.msra.mxu0 0.0
    %186 = vmatprep.subr.mxu0 0.0
    %187 = vmatpush1.msra.mxu0 0.0
    %188 = vmatprep.subr.mxu0 0.0
    %189 = vmatpush1.msra.mxu0 0.0
    %190 = vmatprep.subr.mxu0 0.0
    %191 = vmatpush1.msra.mxu0 0.0
    %192 = vmatprep.subr.mxu0 0.0
    %193 = vmatpush1.msra.mxu0 0.0
    %194 = vmatprep.subr.mxu0 0.0
    %195 = vmatpush1.msra.mxu0 0.0
    %196 = vmatprep.subr.mxu0 0.0
    %197 = vmatpush1.msra.mxu0 0.0
    %198 = vmatprep.subr.mxu0 0.0
    %199 = vmatpush1.msra.mxu0 0.0
    %200 = vmatprep.subr.mxu0 0.0
    %201 = vmatpush1.msra.mxu0 0.0
    %202 = vmatprep.subr.mxu0 0.0
    %203 = vmatpush1.msra.mxu0 0.0
    %204 = vmatprep.subr.mxu0 0.0
    %205 = vmatpush1.msra.mxu0 0.0
    %206 = vmatprep.subr.mxu0 0.0
    %207 = vmatpush1.msra.mxu0 0.0
    %208 = vmatprep.subr.mxu0 0.0
    %209 = vmatpush1.msra.mxu0 0.0
    %210 = vmatprep.subr.mxu0 0.0
    %211 = vmatpush1.msra.mxu0 0.0
    %212 = vmatprep.subr.mxu0 0.0
    %213 = vmatpush1.msra.mxu0 0.0
    %214 = vmatprep.subr.mxu0 0.0
    %215 = vmatpush1.msra.mxu0 0.0
    %216 = vmatprep.subr.mxu0 0.0
    %217 = vmatpush1.msra.mxu0 0.0
    %218 = vmatprep.subr.mxu0 0.0
    %219 = vmatpush1.msra.mxu0 0.0
    %220 = vmatprep.subr.mxu0 0.0
    %221 = vmatpush1.msra.mxu0 0.0
    %222 = vmatprep.subr.mxu0 0.0
    %223 = vmatpush1.msra.mxu0 0.0
    %224 = vmatprep.mubr.f32.mxu0 0.0
    %225 = vmatmul.mubr.f32.gmra.mrb[0].mxu0 %v145
    %v226 = vpop.f32.mrb[0].mxu0
    %v227 = vadd.f32 %v125, %v226
    %v228 = vpop.f32.mrb[0].mxu0
    %229 = vmatprep.mubr.f32.mxu0 0.0
    %230 = vmatmul.mubr.f32.gmra.mrb[0].mxu0 %v148
    %v231 = vpop.f32.mrb[0].mxu0
    %v232 = vadd.f32 %v130, %v231
    %v233 = vpop.f32.mrb[0].mxu0
    %234 = vmatprep.mubr.f32.mxu0 0.0
    %235 = vmatmul.mubr.f32.gmra.mrb[0].mxu0 %v151
    %v236 = vpop.f32.mrb[0].mxu0
    %v237 = vadd.f32 %v135, %v236
    %v238 = vpop.f32.mrb[0].mxu0
    %239 = vmatprep.mubr.f32.mxu0 0.0
    %240 = vmatmul.mubr.f32.gmra.mrb[0].mxu0 %v154
    %v241 = vpop.f32.mrb[0].mxu0
    %v242 = vadd.f32 %v140, %v241
    %v243 = vpop.f32.mrb[0].mxu0
    %244 = vdwg.mxu0
    %v245 = vld [vmem:[%s6] sm:$0xff]
    %v246 = vld [vmem:[%s6 + $0x8] sm:$0xff]
    %v247 = vld [vmem:[%s6 + $0x10] sm:$0xff]
    %v248 = vld [vmem:[%s6 + $0x18] sm:$0xff]
    %250 = vset.pattern.permute.xlu0 0
    %251 = vperm.xlu0 %250, %v245
    %v252 = vpop.permute.xlu0 %251
    %255 = vset.pattern.permute.xlu0 0
    %256 = vperm.xlu0 %255, %v246
    %v257 = vpop.permute.xlu0 %256
    %260 = vset.pattern.permute.xlu0 0
    %261 = vperm.xlu0 %260, %v247
    %v262 = vpop.permute.xlu0 %261
    %265 = vset.pattern.permute.xlu0 0
    %266 = vperm.xlu0 %265, %v248
    %v267 = vpop.permute.xlu0 %266
    %v269 = vadd.f32 %v227, %v252
    %v270 = vadd.f32 %v232, %v257
    %v271 = vadd.f32 %v237, %v262
    %v272 = vadd.f32 %v242, %v267
    %vm273 = vcmp.gt.f32.partialorder %v269, 0.0
    %vm274 = vcmp.gt.f32.partialorder %v270, 0.0
    %vm275 = vcmp.gt.f32.partialorder %v271, 0.0
    %vm276 = vcmp.gt.f32.partialorder %v272, 0.0
    %v277 = vmul.f32 %v269, 0.01
    %v278 = vmul.f32 %v270, 0.01
    %v279 = vmul.f32 %v271, 0.01
    %v280 = vmul.f32 %v272, 0.01
    %v281 = vsel %vm273, %v269, %v277
    %v282 = vsel %vm274, %v270, %v278
    %v283 = vsel %vm275, %v271, %v279
    %v284 = vsel %vm276, %v272, %v280
    %v285 = vld [vmem:[%s4] sm:$0xff]
    %v286 = vld [vmem:[%s4 + $0x8] sm:$0xff]
    %v287 = vld [vmem:[%s4 + $0x10] sm:$0xff]
    %v288 = vld [vmem:[%s4 + $0x18] sm:$0xff]
    %289 = vset.pattern.permute.xlu0 1
    %290 = vperm.xlu0 %289, %v245
    %v291 = vpop.permute.xlu0 %290
    %293 = vset.pattern.permute.xlu0 1
    %294 = vperm.xlu0 %293, %v246
    %v295 = vpop.permute.xlu0 %294
    %297 = vset.pattern.permute.xlu0 1
    %298 = vperm.xlu0 %297, %v247
    %v299 = vpop.permute.xlu0 %298
    %301 = vset.pattern.permute.xlu0 1
    %302 = vperm.xlu0 %301, %v248
    %v303 = vpop.permute.xlu0 %302
    %vm305 = vcmask 261120
    %v307 = vsel %vm305, %v285, 0
    %v310 = vsel %vm305, %v286, 0
    %v313 = vsel %vm305, %v287, 0
    %v316 = vsel %vm305, %v288, 0
    %318 = vmatprep.subr.mxu0 0.0
    %319 = vmatpush1.msra.mxu0 %v281
    %320 = vmatprep.subr.mxu0 0.0
    %321 = vmatpush1.msra.mxu0 %v282
    %322 = vmatprep.subr.mxu0 0.0
    %323 = vmatpush1.msra.mxu0 %v283
    %324 = vmatprep.subr.mxu0 0.0
    %325 = vmatpush1.msra.mxu0 %v284
    %326 = vmatprep.subr.mxu0 0.0
    %327 = vmatpush1.msra.mxu0 0.0
    %328 = vmatprep.subr.mxu0 0.0
    %329 = vmatpush1.msra.mxu0 0.0
    %330 = vmatprep.subr.mxu0 0.0
    %331 = vmatpush1.msra.mxu0 0.0
    %332 = vmatprep.subr.mxu0 0.0
    %333 = vmatpush1.msra.mxu0 0.0
    %334 = vmatprep.subr.mxu0 0.0
    %335 = vmatpush1.msra.mxu0 0.0
    %336 = vmatprep.subr.mxu0 0.0
    %337 = vmatpush1.msra.mxu0 0.0
    %338 = vmatprep.subr.mxu0 0.0
    %339 = vmatpush1.msra.mxu0 0.0
    %340 = vmatprep.subr.mxu0 0.0
    %341 = vmatpush1.msra.mxu0 0.0
    %342 = vmatprep.subr.mxu0 0.0
    %343 = vmatpush1.msra.mxu0 0.0
    %344 = vmatprep.subr.mxu0 0.0
    %345 = vmatpush1.msra.mxu0 0.0
    %346 = vmatprep.subr.mxu0 0.0
    %347 = vmatpush1.msra.mxu0 0.0
    %348 = vmatprep.subr.mxu0 0.0
    %349 = vmatpush1.msra.mxu0 0.0
    %350 = vmatprep.subr.mxu0 0.0
    %351 = vmatpush1.msra.mxu0 0.0
    %352 = vmatprep.subr.mxu0 0.0
    %353 = vmatpush1.msra.mxu0 0.0
    %354 = vmatprep.subr.mxu0 0.0
    %355 = vmatpush1.msra.mxu0 0.0
    %356 = vmatprep.subr.mxu0 0.0
    %357 = vmatpush1.msra.mxu0 0.0
    %358 = vmatprep.subr.mxu0 0.0
    %359 = vmatpush1.msra.mxu0 0.0
    %360 = vmatprep.subr.mxu0 0.0
    %361 = vmatpush1.msra.mxu0 0.0
    %362 = vmatprep.subr.mxu0 0.0
    %363 = vmatpush1.msra.mxu0 0.0
    %364 = vmatprep.subr.mxu0 0.0
    %365 = vmatpush1.msra.mxu0 0.0
    %366 = vmatprep.subr.mxu0 0.0
    %367 = vmatpush1.msra.mxu0 0.0
    %368 = vmatprep.subr.mxu0 0.0
    %369 = vmatpush1.msra.mxu0 0.0
    %370 = vmatprep.subr.mxu0 0.0
    %371 = vmatpush1.msra.mxu0 0.0
    %372 = vmatprep.subr.mxu0 0.0
    %373 = vmatpush1.msra.mxu0 0.0
    %374 = vmatprep.subr.mxu0 0.0
    %375 = vmatpush1.msra.mxu0 0.0
    %376 = vmatprep.subr.mxu0 0.0
    %377 = vmatpush1.msra.mxu0 0.0
    %378 = vmatprep.subr.mxu0 0.0
    %379 = vmatpush1.msra.mxu0 0.0
    %380 = vmatprep.subr.mxu0 0.0
    %381 = vmatpush1.msra.mxu0 0.0
    %382 = vmatprep.mubr.f32.mxu0 0.0
    %383 = vmatmul.mubr.f32.gmra.mrb[0].mxu0 %v307
    %v384 = vpop.f32.mrb[0].mxu0
    %v385 = vadd.f32 %v291, %v384
    %v386 = vpop.f32.mrb[0].mxu0
    %387 = vmatprep.mubr.f32.mxu0 0.0
    %388 = vmatmul.mubr.f32.gmra.mrb[0].mxu0 %v310
    %v389 = vpop.f32.mrb[0].mxu0
    %v390 = vadd.f32 %v295, %v389
    %v391 = vpop.f32.mrb[0].mxu0
    %392 = vmatprep.mubr.f32.mxu0 0.0
    %393 = vmatmul.mubr.f32.gmra.mrb[0].mxu0 %v313
    %v394 = vpop.f32.mrb[0].mxu0
    %v395 = vadd.f32 %v299, %v394
    %v396 = vpop.f32.mrb[0].mxu0
    %397 = vmatprep.mubr.f32.mxu0 0.0
    %398 = vmatmul.mubr.f32.gmra.mrb[0].mxu0 %v316
    %v399 = vpop.f32.mrb[0].mxu0
    %v400 = vadd.f32 %v303, %v399
    %v401 = vpop.f32.mrb[0].mxu0
    %402 = vdwg.mxu0
    %vm403 = vcmp.gt.f32.partialorder %v385, 0.0
    %vm404 = vcmp.gt.f32.partialorder %v390, 0.0
    %vm405 = vcmp.gt.f32.partialorder %v395, 0.0
    %vm406 = vcmp.gt.f32.partialorder %v400, 0.0
    %v407 = vmul.f32 %v385, 0.01
    %v408 = vmul.f32 %v390, 0.01
    %v409 = vmul.f32 %v395, 0.01
    %v410 = vmul.f32 %v400, 0.01
    %v411 = vsel %vm403, %v385, %v407
    %v412 = vsel %vm404, %v390, %v408
    %v413 = vsel %vm405, %v395, %v409
    %v414 = vsel %vm406, %v400, %v410
    %v415 = vld [vmem:[%s5] sm:$0x1]
    %s416 = sld [smem:[#allocation2]]
    %v417 = vstv %s416
    %v419 = vsel %vm305, %v415, 0
    %421 = vmatprep.subr.mxu0 0.0
    %422 = vmatpush1.msra.mxu0 %v411
    %423 = vmatprep.subr.mxu0 0.0
    %424 = vmatpush1.msra.mxu0 %v412
    %425 = vmatprep.subr.mxu0 0.0
    %426 = vmatpush1.msra.mxu0 %v413
    %427 = vmatprep.subr.mxu0 0.0
    %428 = vmatpush1.msra.mxu0 %v414
    %429 = vmatprep.subr.mxu0 0.0
    %430 = vmatpush1.msra.mxu0 0.0
    %431 = vmatprep.subr.mxu0 0.0
    %432 = vmatpush1.msra.mxu0 0.0
    %433 = vmatprep.subr.mxu0 0.0
    %434 = vmatpush1.msra.mxu0 0.0
    %435 = vmatprep.subr.mxu0 0.0
    %436 = vmatpush1.msra.mxu0 0.0
    %437 = vmatprep.subr.mxu0 0.0
    %438 = vmatpush1.msra.mxu0 0.0
    %439 = vmatprep.subr.mxu0 0.0
    %440 = vmatpush1.msra.mxu0 0.0
    %441 = vmatprep.subr.mxu0 0.0
    %442 = vmatpush1.msra.mxu0 0.0
    %443 = vmatprep.subr.mxu0 0.0
    %444 = vmatpush1.msra.mxu0 0.0
    %445 = vmatprep.subr.mxu0 0.0
    %446 = vmatpush1.msra.mxu0 0.0
    %447 = vmatprep.subr.mxu0 0.0
    %448 = vmatpush1.msra.mxu0 0.0
    %449 = vmatprep.subr.mxu0 0.0
    %450 = vmatpush1.msra.mxu0 0.0
    %451 = vmatprep.subr.mxu0 0.0
    %452 = vmatpush1.msra.mxu0 0.0
    %453 = vmatprep.subr.mxu0 0.0
    %454 = vmatpush1.msra.mxu0 0.0
    %455 = vmatprep.subr.mxu0 0.0
    %456 = vmatpush1.msra.mxu0 0.0
    %457 = vmatprep.subr.mxu0 0.0
    %458 = vmatpush1.msra.mxu0 0.0
    %459 = vmatprep.subr.mxu0 0.0
    %460 = vmatpush1.msra.mxu0 0.0
    %461 = vmatprep.subr.mxu0 0.0
    %462 = vmatpush1.msra.mxu0 0.0
    %463 = vmatprep.subr.mxu0 0.0
    %464 = vmatpush1.msra.mxu0 0.0
    %465 = vmatprep.subr.mxu0 0.0
    %466 = vmatpush1.msra.mxu0 0.0
    %467 = vmatprep.subr.mxu0 0.0
    %468 = vmatpush1.msra.mxu0 0.0
    %469 = vmatprep.subr.mxu0 0.0
    %470 = vmatpush1.msra.mxu0 0.0
    %471 = vmatprep.subr.mxu0 0.0
    %472 = vmatpush1.msra.mxu0 0.0
    %473 = vmatprep.subr.mxu0 0.0
    %474 = vmatpush1.msra.mxu0 0.0
    %475 = vmatprep.subr.mxu0 0.0
    %476 = vmatpush1.msra.mxu0 0.0
    %477 = vmatprep.subr.mxu0 0.0
    %478 = vmatpush1.msra.mxu0 0.0
    %479 = vmatprep.subr.mxu0 0.0
    %480 = vmatpush1.msra.mxu0 0.0
    %481 = vmatprep.subr.mxu0 0.0
    %482 = vmatpush1.msra.mxu0 0.0
    %483 = vmatprep.subr.mxu0 0.0
    %484 = vmatpush1.msra.mxu0 0.0
    %485 = vmatprep.mubr.f32.mxu0 0.0
    %486 = vmatmul.mubr.f32.gmra.mrb[0].mxu0 %v419
    %v487 = vpop.f32.mrb[0].mxu0
    %v488 = vadd.f32 %v417, %v487
    %v489 = vpop.f32.mrb[0].mxu0
    %490 = vdwg.mxu0
    %v491 = vxor.u32 %v488, 2147483648
    %v492 = vmul.f32 %v491, 1.442695
    %v493 = vpow.pop %v492
    %v494 = vadd.f32 %v493, 1.0
    %v495 = vrcp.pop %v494
    %v496 = vmul.f32 1.0, %v495
    %497 = vst [vmem:[#allocation3] sm:$0x1] %v496
    // Predicated region
    $region34: #{tpu_custom_call.1} parent=1 // pred_check
      _
    $region35: #{tpu_custom_call.1} parent=1 // pred_check_branch
      %499 = sbr.rel (0) target = $region37
    $region36: #{tpu_custom_call.1} parent=1 // pred_region
      %s501 = ssub.s32 16, 16
      %502 = vsyncadd [#allocation4], %s501
      %s504 = sshll.u32 [#allocation3], 4
      %s505 = int_to_ptr.vmem [resolvable:$true] %s504
      %507 = dma.vmem_to_hbm [thread:$0]  %s505, 16, %s8, [#allocation4]
    $region37: #{tpu_custom_call.1} parent=1 // pred_fallthru
      _
    // Predicated region
    $region38: #{tpu_custom_call.1} parent=1 // pred_check
      _
    $region39: #{tpu_custom_call.1} parent=1 // pred_check_branch
      %509 = sbr.rel (0) target = $region41
    $region40: #{tpu_custom_call.1} parent=1 // pred_region
      %510 = dma.done [#allocation4], 16
    $region41: #{tpu_custom_call.1} parent=1 // pred_fallthru
      _
    %511 = vsyncpa [#allocation4], 1

</llo_original>
